<compile_context>
chip_gen: v7x
topology: tpu7x:2x2x1
jax: 0.10.0
libtpu: 0.0.40
codegen_flags: <defaults>
</compile_context>

<pallas_src>
import math
import jax
import jax.numpy as jnp
from jax import lax
from jax.experimental import pallas as pl
from jax.experimental.pallas import tpu as pltpu

_MIB = 1024 * 1024


# ----------------------------------------------------------------------------
# Kernels
# ----------------------------------------------------------------------------
def _linear_bias_kernel(x_ref, w_ref, b_ref, o_ref):
    """Single K-step: full contraction in one MXU pass, bias fused, no scratch."""
    x = x_ref[...].astype(w_ref.dtype)          # no-op when dtypes already match
    acc = lax.dot_general(
        x, w_ref[...],
        dimension_numbers=(((1,), (1,)), ((), ())),   # x[M,K] . w[N,K]^T
        preferred_element_type=jnp.float32,
    )
    o_ref[...] = (acc + b_ref[...]).astype(o_ref.dtype)


def _linear_acc_kernel(x_ref, w_ref, b_ref, o_ref, acc_ref):
    """Multi K-step: f32 accumulator in VMEM, bias folded into the k==0 init."""
    k = pl.program_id(2)

    @pl.when(k == 0)
    def _():
        acc_ref[...] = jnp.broadcast_to(b_ref[...], acc_ref.shape)

    x = x_ref[...].astype(w_ref.dtype)
    acc_ref[...] += lax.dot_general(
        x, w_ref[...],
        dimension_numbers=(((1,), (1,)), ((), ())),
        preferred_element_type=jnp.float32,
    )

    @pl.when(k == pl.num_programs(2) - 1)
    def _():
        o_ref[...] = acc_ref[...].astype(o_ref.dtype)


# ----------------------------------------------------------------------------
# Tiling helpers
# ----------------------------------------------------------------------------
def _round_up(x, m):
    return ((x + m - 1) // m) * m


def _vmem_capacity_bytes():
    """Physical VMEM of the local TPU (fallback: conservative 64 MiB = v7x)."""
    try:
        info = pltpu.get_tpu_info()
        cap = getattr(info, "vmem_capacity_bytes", None)
        if cap:
            return int(cap)
    except Exception:
        pass
    return 64 * _MIB


def _row_tile(dim, pref, align):
    """Tile for the sublane/row dim (tm).

    Small dims use the full extent (no padding needed).  Large dims keep the
    MXU-friendly preferred tile and pad M up instead of shrinking tm: padding
    the activations is cheap, a short tm starves the MXU.
    """
    if dim <= pref:
        return dim, dim
    t = max(align, (pref // align) * align)
    return t, _round_up(dim, t)


def _lane_tile(dim, pref, full_cap):
    """Tile for a dim that lands on the lane axis (tn / tk).

    Preference order:
      1. full extent when the dim fits in one tile (<= full_cap),
      2. a 128-aligned tile >= 512 that minimizes padding (exact divisors win
         with pad 0), tie-broken toward the largest tile (fewest revisits /
         k-steps -> less accumulator traffic).
    """
    if dim <= full_cap:
        return dim, dim
    pref = max(512, (pref // 128) * 128)
    best_t, best_pad = 512, _round_up(dim, 512) - dim
    t = pref
    while t >= 512:
        pad = _round_up(dim, t) - dim
        if pad < best_pad or (pad == best_pad and t > best_t):
            best_t, best_pad = t, pad
        t -= 128
    return best_t, dim + best_pad


# ----------------------------------------------------------------------------
# Wrapper
# ----------------------------------------------------------------------------
def linear_classifier_forward(x, weight, bias=None, *, mxu_dtype=jnp.bfloat16,
                              tm=None, tn=None, tk=None):
    """x: [M, K]; weight: [N, K] (native PyTorch layout); bias: [N] or None.

    Returns [M, N] = x @ weight.T + bias, accumulated in f32, output in x.dtype.
    MXU operands default to bf16 (native TPU peak); pass mxu_dtype=jnp.float32
    for bit-exact f32 semantics.
    """
    M, K = x.shape
    N, K2 = weight.shape
    assert K == K2, "in_features mismatch between x and weight"
    out_dtype = x.dtype

    # ---- generation-aware tile plan & VMEM budget ---------------------------
    vmem_cap = _vmem_capacity_bytes()
    big_vmem = vmem_cap >= 100 * _MIB          # v5e / v6e: 128 MiB VMEM
    if big_vmem:                               # low HBM BW -> bigger, squarer tiles
        tm_pref = tm or 512
        tn_pref = tn or 512
        tk_pref = tk or 4096
        vmem_ceiling = 96 * _MIB
        n_full_cap = 2048
    else:                                      # v7x: 64 MiB VMEM, 3.2 TB/s, 2 TCs
        tm_pref = tm or 256
        tn_pref = tn or 512
        tk_pref = tk or 2048
        vmem_ceiling = 40 * _MIB
        n_full_cap = 1024
    k_full_cap = max(tk_pref, 4096)

    x_isize = jnp.dtype(x.dtype).itemsize
    w_isize = jnp.dtype(mxu_dtype).itemsize
    o_isize = jnp.dtype(out_dtype).itemsize
    sub_align = max(8, 32 // min(x_isize, o_isize))   # 8 f32 / 16 bf16 / 32 int8

    tm_, Mp = _row_tile(M, tm_pref, sub_align)
    tn_, Np = _lane_tile(N, tn_pref, n_full_cap)
    tk_, Kp = _lane_tile(K, tk_pref, k_full_cap)

    gm, gn, gk = Mp // tm_, Np // tn_, Kp // tk_

    # Megacore: give the parallel axes >= 2 iterations when tiles are big enough
    # so both v7x TensorCores get work (harmless on single-TC chips).
    if gm * gn < 2:
        if tn_ >= 512 and tn_ % 256 == 0:
            tn_ //= 2
        elif tm_ >= 256 and tm_ % (2 * sub_align) == 0:
            tm_ //= 2
        gm, gn = Mp // tm_, Np // tn_

    # ---- operand prep (avoid touching the weight per call when possible) ----
    if weight.dtype != mxu_dtype:
        # TODO(synk): cast once at init via prepare_linear_params to avoid this
        # per-call pass over the static weight.
        weight = weight.astype(mxu_dtype)
    if (Np, Kp) != (N, K):
        # TODO(synk): for repeated calls with an awkward N/K, pad the weight once
        # at init and cache it instead of re-materializing it per call.
        weight = jnp.zeros((Np, Kp), mxu_dtype).at[:N, :K].set(weight)
    if (Mp, Kp) != (M, K):
        x = jnp.zeros((Mp, Kp), x.dtype).at[:M, :K].set(x)   # cheap: activations only
    if bias is None:
        b2 = jnp.zeros((1, Np), jnp.float32)
    else:
        b2 = bias.astype(jnp.float32).reshape(1, N)
        if Np != N:
            b2 = jnp.zeros((1, Np), jnp.float32).at[:, :N].set(b2)

    # ---- cost / VMEM bookkeeping ---------------------------------------------
    cost = pl.CostEstimate(
        flops=2 * M * N * K,
        transcendentals=0,
        # Actual traffic including revisits (x re-read per N-tile, w per M-tile).
        bytes_accessed=int(gn * Mp * Kp * x_isize + gm * Np * Kp * w_isize
                           + Mp * Np * o_isize + Np * 4),
    )

    deep_w = (gm == 1) and (gn * gk >= 4)      # small-M: deepen the weight stream
    w_bufs = 3 if deep_w else 2
    vmem_est = (2 * tm_ * tk_ * x_isize + w_bufs * tn_ * tk_ * w_isize
                + 2 * tn_ * 4 + 2 * tm_ * tn_ * o_isize
                + (tm_ * tn_ * 4 if gk > 1 else 0))
    vmem_limit = int(min(vmem_ceiling, max(32 * _MIB, 2 * vmem_est)))

    # ---- pallas_call ----------------------------------------------------------
    if gk == 1:
        # K fits one tile: pure streaming kernel, no accumulator, no pl.when.
        if deep_w:
            w_spec = pl.BlockSpec((tn_, Kp), lambda i, j: (j, 0),
                                  pipeline_mode=pl.Buffered(3))
        else:
            w_spec = pl.BlockSpec((tn_, Kp), lambda i, j: (j, 0))
        out_p = pl.pallas_call(
            _linear_bias_kernel,
            out_shape=jax.ShapeDtypeStruct((Mp, Np), out_dtype),
            grid_spec=pltpu.PrefetchScalarGridSpec(
                num_scalar_prefetch=0,
                grid=(gm, gn),
                in_specs=[
                    pl.BlockSpec((tm_, Kp), lambda i, j: (i, 0)),   # x tile
                    w_spec,                                          # w tile ([N,K] native)
                    pl.BlockSpec((1, tn_), lambda i, j: (0, j)),     # bias row
                ],
                out_specs=pl.BlockSpec((tm_, tn_), lambda i, j: (i, j)),
            ),
            compiler_params=pltpu.CompilerParams(
                dimension_semantics=("parallel", "parallel"),
                vmem_limit_bytes=vmem_limit,
            ),
            cost_estimate=cost,
        )(x, weight, b2)
    else:
        if deep_w:
            w_spec = pl.BlockSpec((tn_, tk_), lambda i, j, k: (j, k),
                                  pipeline_mode=pl.Buffered(3))
        else:
            w_spec = pl.BlockSpec((tn_, tk_), lambda i, j, k: (j, k))
        out_p = pl.pallas_call(
            _linear_acc_kernel,
            out_shape=jax.ShapeDtypeStruct((Mp, Np), out_dtype),
            grid_spec=pltpu.PrefetchScalarGridSpec(
                num_scalar_prefetch=0,
                grid=(gm, gn, gk),
                in_specs=[
                    pl.BlockSpec((tm_, tk_), lambda i, j, k: (i, k)),  # x tile
                    w_spec,                                             # w tile
                    pl.BlockSpec((1, tn_), lambda i, j, k: (0, j)),     # bias (k-invariant)
                ],
                out_specs=pl.BlockSpec((tm_, tn_), lambda i, j, k: (i, j)),
                scratch_shapes=[pltpu.VMEM((tm_, tn_), jnp.float32)],
            ),
            compiler_params=pltpu.CompilerParams(
                dimension_semantics=("parallel", "parallel", "arbitrary"),
                vmem_limit_bytes=vmem_limit,
            ),
            cost_estimate=cost,
        )(x, weight, b2)

    if (Mp, Np) != (M, N):
        return out_p[:M, :N]
    return out_p


# ----------------------------------------------------------------------------
# Parameter init / prep (replicating LinearClassifier.__init__ / reset_parameters)
# ----------------------------------------------------------------------------
def init_linear_params(key, in_features, out_features, bias=True, zero_init=False):
    if zero_init:
        w = jnp.zeros((out_features, in_features), jnp.float32)
        b = jnp.zeros((out_features,), jnp.float32) if bias else None
        return w, b
    kw, kb = jax.random.split(key)
    # kaiming_uniform_(a=sqrt(5)) on [fan_out, fan_in] -> U(-1/sqrt(fan_in), +1/sqrt(fan_in))
    fan_in = in_features
    w_bound = math.sqrt(6.0 / ((1.0 + 5.0) * fan_in))
    w = jax.random.uniform(
        kw, (out_features, in_features), jnp.float32, -w_bound, w_bound
    )
    if bias:
        b_bound = 1.0 / math.sqrt(fan_in)
        b = jax.random.uniform(kb, (out_features,), jnp.float32, -b_bound, b_bound)
    else:
        b = None
    return w, b


def prepare_linear_params(weight, bias=None, mxu_dtype=jnp.bfloat16):
    """One-time parameter prep: cast the static weight to the MXU dtype so every
    forward call reads half the HBM bytes and never re-casts the weight."""
    w = weight.astype(mxu_dtype)
    b = None if bias is None else bias.astype(jnp.float32)
    return w, b


if __name__ == "__main__":
    key = jax.random.PRNGKey(0)
    k_x, k_p = jax.random.split(key)

    batch, in_features, out_features = 16, 64, 32
    x = jax.random.normal(k_x, (batch, in_features), jnp.float32)
    weight, bias = init_linear_params(k_p, in_features, out_features, bias=True)

    # One-time bf16 cast of the static weight (module-init time in PyTorch terms).
    w_prep, b_prep = prepare_linear_params(weight, bias)

    out = jax.block_until_ready(linear_classifier_forward(x, w_prep, b_prep))
    assert out.shape == (batch, out_features)

    # Reference 1: identical precision recipe (bf16 operands, f32 accumulation).
    ref_bf16 = lax.dot_general(
        x.astype(jnp.bfloat16), weight.astype(jnp.bfloat16),
        dimension_numbers=(((1,), (1,)), ((), ())),
        preferred_element_type=jnp.float32,
    ) + bias
    # Reference 2: exact f32 PyTorch semantics (looser tolerance for bf16 MXU).
    ref_f32 = x @ weight.T + bias

    assert jnp.allclose(out, ref_bf16, atol=2e-3, rtol=2e-3), "mismatch vs bf16 ref"
    assert jnp.allclose(out, ref_f32, atol=5e-2, rtol=5e-2), "mismatch vs f32 ref"

    # Exact-f32 MXU path also works and matches tightly.
    out_f32 = jax.block_until_ready(
        linear_classifier_forward(x, weight, bias, mxu_dtype=jnp.float32))
    assert jnp.allclose(out_f32, ref_f32, atol=1e-5, rtol=1e-5), "mismatch (f32 MXU)"

    print("KERNEL_OK")
</pallas_src>

<mosaic_0001>
module attributes {stable_mosaic.version = 11 : i64} {
  func.func @_linear_bias_kernel(%arg0: i32, %arg1: i32, %arg2: memref<16x64xf32, #tpu.memory_space<vmem>>, %arg3: memref<32x64xbf16, #tpu.memory_space<vmem>>, %arg4: memref<1x32xf32, #tpu.memory_space<vmem>>, %arg5: memref<16x32xf32, #tpu.memory_space<vmem>>) attributes {dimension_semantics = [#tpu.dimension_semantics<parallel>, #tpu.dimension_semantics<parallel>], iteration_bounds = array<i64: 1, 1>, scalar_prefetch = 0 : i64, scratch_operands = 0 : i64, tpu.core_type = #tpu.core_type<tc>, window_params = [{transform_indices = @transform_0, window_bounds = array<i64: 16, 64>}, {transform_indices = @transform_1, window_bounds = array<i64: 32, 64>}, {transform_indices = @transform_2, window_bounds = array<i64: 1, 32>}, {transform_indices = @transform_3, window_bounds = array<i64: 16, 32>}]} {
    %c0 = arith.constant 0 : index
    %c0_0 = arith.constant 0 : index
    %0 = vector.load %arg2[%c0, %c0_0] : memref<16x64xf32, #tpu.memory_space<vmem>>, vector<16x64xf32>
    %1 = arith.truncf %0 : vector<16x64xf32> to vector<16x64xbf16>
    %c0_1 = arith.constant 0 : index
    %c0_2 = arith.constant 0 : index
    %2 = vector.load %arg3[%c0_1, %c0_2] : memref<32x64xbf16, #tpu.memory_space<vmem>>, vector<32x64xbf16>
    %cst = arith.constant dense<0.000000e+00> : vector<16x32xf32>
    %3 = tpu.matmul %1, %2, %cst {dimension_numbers = #tpu.dot_dimension_numbers<[1], [1], [0], [0], [0, 0, 1, 0], [], []>} : vector<16x64xbf16>, vector<32x64xbf16>, vector<16x32xf32> -> vector<16x32xf32>
    %c0_3 = arith.constant 0 : index
    %c0_4 = arith.constant 0 : index
    %4 = vector.load %arg4[%c0_3, %c0_4] : memref<1x32xf32, #tpu.memory_space<vmem>>, vector<1x32xf32>
    %5 = vector.broadcast %4 : vector<1x32xf32> to vector<16x32xf32>
    %6 = arith.addf %3, %5 : vector<16x32xf32>
    %c0_5 = arith.constant 0 : index
    %c0_6 = arith.constant 0 : index
    %7 = vector.load %arg5[%c0_5, %c0_6] : memref<16x32xf32, #tpu.memory_space<vmem>>, vector<16x32xf32>
    tpu.vector_store %arg5[%c0_5, %c0_6], %6 {strides = array<i32>} : memref<16x32xf32, #tpu.memory_space<vmem>>, vector<16x32xf32>,
    return
  }
  func.func @transform_0(%arg0: i32, %arg1: i32) -> (i32, i32) {
    %c0_i32 = arith.constant 0 : i32
    %c0_i32_0 = arith.constant 0 : i32
    return %arg0, %c0_i32 : i32, i32
  }
  func.func @transform_1(%arg0: i32, %arg1: i32) -> (i32, i32) {
    %c0_i32 = arith.constant 0 : i32
    %c0_i32_0 = arith.constant 0 : i32
    return %arg1, %c0_i32 : i32, i32
  }
  func.func @transform_2(%arg0: i32, %arg1: i32) -> (i32, i32) {
    %c0_i32 = arith.constant 0 : i32
    %c0_i32_0 = arith.constant 0 : i32
    return %c0_i32, %arg1 : i32, i32
  }
  func.func @transform_3(%arg0: i32, %arg1: i32) -> (i32, i32) {
    %c0_i32 = arith.constant 0 : i32
    return %arg0, %arg1 : i32, i32
  }
}

</mosaic_0001>

<llo_original>
// kernel: tpu_custom_call.1
$region0: #{tpu_custom_call.1}
  #allocation0 [shape = 'u32[]', space=smem, size = 0x4, offset = 0x4, fixed_abs, tag = 'smem constant byte address 0x4 - core index']
  #allocation1 [shape = 'u32[144,128]{1,0:T(1,128)}', space=vmem, size = 0x12000, scoped, tag = 'internal scratch']
  %s0 = inlined_call_operand.hbm [shape: f32[16,64], index: 0, kind: input, shape index: {}]
  %s1 = inlined_call_operand.hbm [shape: bf16[32,64], index: 1, kind: input, shape index: {}]
  %s2 = inlined_call_operand.vmem [shape: f32[1,32], index: 2, kind: input, shape index: {}]
  %s3 = inlined_call_operand.hbm [shape: f32[16,32], index: 3, kind: output, shape index: {}]
  %s4 = sld [smem:[#allocation0]]
  $region30: #{tpu_custom_call.1} parent=0
    _
  %s6 = ssub.s32 1, %s4
  %s7 = scalar_select 0, %s6, %s4
  $region1: #{tpu_custom_call.1} parent=0
    #allocation2 [shape = 'u8[8192]{0}', space=vmem, size = 0x2000, scoped, tag = 'input window, operand 0, single buffered']
    #allocation3 [shape = 's32[1]{0}', space=sflag, size = 0x4, scoped, tag = 'scoped memory for tpu_custom_call.1']
    #allocation4 [shape = 's32[1]{0}', space=sflag, size = 0x4, scoped, tag = 'scoped memory for tpu_custom_call.1']
    #allocation5 [shape = 'u8[8192]{0}', space=vmem, size = 0x2000, scoped, tag = 'input window, operand 1, single buffered']
    #allocation6 [shape = 's32[1]{0}', space=sflag, size = 0x4, scoped, tag = 'scoped memory for tpu_custom_call.1']
    #allocation7 [shape = 'u8[8192]{0}', space=vmem, size = 0x2000, scoped, tag = 'output window, operand 0, single buffered']
    %8 = vsyncpa [#allocation3], 0
    %9 = vsyncpa [#allocation6], 0
    %10 = vsyncpa [#allocation4], 0
    // Predicated region
    $region2: #{tpu_custom_call.1} parent=1 // pred_check
      _
    $region3: #{tpu_custom_call.1} parent=1 // pred_check_branch
      %12 = sbr.rel (0) target = $region5
    $region4: #{tpu_custom_call.1} parent=1 // pred_region
      %s14 = ssub.s32 256, 256
      %15 = vsyncadd [#allocation3], %s14
      %s16 = sshll.u32 [#allocation2], 4
      %s17 = int_to_ptr.vmem [resolvable:$true] %s16
      %22 = dma.hbm_to_vmem [thread:$0]  %s0, 256, %s17, [#allocation3], 128, 128, 8
    $region5: #{tpu_custom_call.1} parent=1 // pred_fallthru
      _
    // Predicated region
    $region6: #{tpu_custom_call.1} parent=1 // pred_check
      _
    $region7: #{tpu_custom_call.1} parent=1 // pred_check_branch
      %24 = sbr.rel (0) target = $region9
    $region8: #{tpu_custom_call.1} parent=1 // pred_region
      %s26 = ssub.s32 256, 256
      %27 = vsyncadd [#allocation6], %s26
      %s28 = sshll.u32 [#allocation5], 4
      %s29 = int_to_ptr.vmem [resolvable:$true] %s28
      %34 = dma.hbm_to_vmem [thread:$0]  %s1, 256, %s29, [#allocation6], 64, 64, 4
    $region9: #{tpu_custom_call.1} parent=1 // pred_fallthru
      _
    // Predicated region
    $region10: #{tpu_custom_call.1} parent=1 // pred_check
      _
    $region11: #{tpu_custom_call.1} parent=1 // pred_check_branch
      %36 = sbr.rel (0) target = $region13
    $region12: #{tpu_custom_call.1} parent=1 // pred_region
      _
    $region13: #{tpu_custom_call.1} parent=1 // pred_fallthru
      _
    // Predicated region
    $region14: #{tpu_custom_call.1} parent=1 // pred_check
      _
    $region15: #{tpu_custom_call.1} parent=1 // pred_check_branch
      %38 = sbr.rel (0) target = $region17
    $region16: #{tpu_custom_call.1} parent=1 // pred_region
      %39 = dma.done [#allocation3], 256
    $region17: #{tpu_custom_call.1} parent=1 // pred_fallthru
      _
    // Predicated region
    $region18: #{tpu_custom_call.1} parent=1 // pred_check
      _
    $region19: #{tpu_custom_call.1} parent=1 // pred_check_branch
      %41 = sbr.rel (0) target = $region21
    $region20: #{tpu_custom_call.1} parent=1 // pred_region
      %42 = dma.done [#allocation6], 256
    $region21: #{tpu_custom_call.1} parent=1 // pred_fallthru
      _
    %v44 = vld [vmem:[#allocation2] sm:$0xff]
    %v45 = vld [vmem:[#allocation2 + $0x8] sm:$0xff]
    %v46 = vpack.c.bf16 %v45, %v44
    %v47 = vld [vmem:[#allocation5] sm:$0xf]
    %v48 = vld [vmem:[#allocation5 + $0x4] sm:$0xf]
    %v49 = vld [vmem:[#allocation5 + $0x8] sm:$0xf]
    %v50 = vld [vmem:[#allocation5 + $0xc] sm:$0xf]
    %v51 = vld [vmem:[%s2] sm:$0x1]
    %v53 = vlaneseq
    %v54 = vshrl.u32 %v53, 7
    %v55 = vsub.s32 0, %v54
    %v56 = vrot.slane %v51, %v55
    %v62 = vunpack.c.l.b16 %v47
    %v63 = vunpack.c.l.b16 %v48
    %v64 = vunpack.c.l.b16 %v49
    %v65 = vunpack.c.l.b16 %v50
    %v66 = vpack.c.b16 %v63, %v62
    %v67 = vpack.c.b16 %v65, %v64
    %vm68 = vcmask 523264
    %v70 = vsel %vm68, %v46, 0
    %v73 = vsel %vm68, %v66, 0
    %v76 = vsel %vm68, %v67, 0
    %78 = vmatprep.subr.bf16.mxu0 0
    %79 = vmatpush1.bf16.xpose.msra.mxu0 %v73
    %80 = vmatprep.subr.bf16.mxu0 0
    %81 = vmatpush1.bf16.xpose.msra.mxu0 %v76
    %82 = vmatprep.subr.bf16.mxu0 0
    %83 = vmatpush1.bf16.xpose.msra.mxu0 0
    %84 = vmatprep.subr.bf16.mxu0 0
    %85 = vmatpush1.bf16.xpose.msra.mxu0 0
    %86 = vmatprep.subr.bf16.mxu0 0
    %87 = vmatpush1.bf16.xpose.msra.mxu0 0
    %88 = vmatprep.subr.bf16.mxu0 0
    %89 = vmatpush1.bf16.xpose.msra.mxu0 0
    %90 = vmatprep.subr.bf16.mxu0 0
    %91 = vmatpush1.bf16.xpose.msra.mxu0 0
    %92 = vmatprep.subr.bf16.mxu0 0
    %93 = vmatpush1.bf16.xpose.msra.mxu0 0
    %94 = vmatprep.subr.bf16.mxu0 0
    %95 = vmatpush1.bf16.xpose.msra.mxu0 0
    %96 = vmatprep.subr.bf16.mxu0 0
    %97 = vmatpush1.bf16.xpose.msra.mxu0 0
    %98 = vmatprep.subr.bf16.mxu0 0
    %99 = vmatpush1.bf16.xpose.msra.mxu0 0
    %100 = vmatprep.subr.bf16.mxu0 0
    %101 = vmatpush1.bf16.xpose.msra.mxu0 0
    %102 = vmatprep.subr.bf16.mxu0 0
    %103 = vmatpush1.bf16.xpose.msra.mxu0 0
    %104 = vmatprep.subr.bf16.mxu0 0
    %105 = vmatpush1.bf16.xpose.msra.mxu0 0
    %106 = vmatprep.subr.bf16.mxu0 0
    %107 = vmatpush1.bf16.xpose.msra.mxu0 0
    %108 = vmatprep.subr.bf16.mxu0 0
    %109 = vmatpush1.bf16.xpose.msra.mxu0 0
    %110 = vmatprep.mubr.bf16.mxu0 0
    %111 = vmatmul.mubr.bf16.gmra.mrb[0].mxu0 %v70
    %v112 = vpop.f32.mrb[0].mxu0
    %v113 = vadd.f32 %v56, %v112
    %v114 = vpop.f32.mrb[0].mxu0
    %v115 = vpop.f32.mrb[0].mxu0
    %v116 = vadd.f32 %v56, %v115
    %v117 = vpop.f32.mrb[0].mxu0
    %118 = vdwg.mxu0
    %vm119 = vcmask 261120
    %120 = vst.msk [vmem:[#allocation7] sm:$0xff] %vm119, %v113
    %121 = vst.msk [vmem:[#allocation7 + $0x8] sm:$0xff] %vm119, %v116
    // Predicated region
    $region22: #{tpu_custom_call.1} parent=1 // pred_check
      _
    $region23: #{tpu_custom_call.1} parent=1 // pred_check_branch
      %123 = sbr.rel (0) target = $region25
    $region24: #{tpu_custom_call.1} parent=1 // pred_region
      %s125 = ssub.s32 256, 256
      %126 = vsyncadd [#allocation4], %s125
      %s127 = sshll.u32 [#allocation7], 4
      %s128 = int_to_ptr.vmem [resolvable:$true] %s127
      %133 = dma.vmem_to_hbm [thread:$0]  %s128, 256, %s3, [#allocation4], 128, 128, 8
    $region25: #{tpu_custom_call.1} parent=1 // pred_fallthru
      _
    // Predicated region
    $region26: #{tpu_custom_call.1} parent=1 // pred_check
      _
    $region27: #{tpu_custom_call.1} parent=1 // pred_check_branch
      %135 = sbr.rel (0) target = $region29
    $region28: #{tpu_custom_call.1} parent=1 // pred_region
      %136 = dma.done [#allocation4], 256
    $region29: #{tpu_custom_call.1} parent=1 // pred_fallthru
      _
    %137 = vsyncpa [#allocation3], 1
    %138 = vsyncpa [#allocation6], 1
    %139 = vsyncpa [#allocation4], 1

</llo_original>
